<compile_context>
chip_gen: v7x
topology: tpu7x:2x2x1
jax: 0.10.0
libtpu: 0.0.40
codegen_flags: <defaults>
</compile_context>

<pallas_src>
import functools
import math

import jax
import jax.numpy as jnp
from jax import lax
from jax.experimental import pallas as pl
from jax.experimental.pallas import tpu as pltpu

_LANE = 128      # pad hidden/output feature dims to multiples of this
_SUBLANE = 8     # pad batch tiles to multiples of this
_NEG_BIG = -1e30 # "minus infinity" for masking padded logits


def _round_up(n, m):
    return ((n + m - 1) // m) * m


def _mlp_kernel(*refs, num_layers, activation, out_valid, param_dtype):
    """Fused MLP on one batch tile.

    refs = (x_ref, w_0, b_0, w_1, b_1, ..., w_{L-1}, b_{L-1}, o_ref)

    Padded weight rows/cols and padded bias entries are zero, so padded
    activation columns stay harmless through every hidden layer (relu/tanh
    give 0; sigmoid gives 0.5 but multiplies zero weight rows of the next
    layer). Only the final softmax masks padded logit lanes explicitly.
    """
    x_ref = refs[0]
    o_ref = refs[-1]
    wb = refs[1:-1]

    # Cast to MXU-native dtype in-VMEM (no XLA-side pad/cast copy of x).
    h = x_ref[...].astype(param_dtype)              # (TB, K0)
    for l in range(num_layers):
        w = wb[2 * l][...]                          # (K[_pad], N_pad)
        b = wb[2 * l + 1][...]                      # (1, N_pad), float32
        # MXU matmul with f32 accumulation; bias added once on the f32 acc.
        y = jnp.dot(h, w, preferred_element_type=jnp.float32) + b

        if l < num_layers - 1:
            if activation == "relu":
                y = jnp.maximum(y, 0.0)
            elif activation == "tanh":
                y = jnp.tanh(y)
            elif activation == "sigmoid":
                # EUP tanh instead of exp + VALU divide.
                y = 0.5 * (jnp.tanh(0.5 * y) + 1.0)
            h = y.astype(param_dtype)               # MXU dtype for next layer
        else:
            # Mask padded logit lanes, numerically stable softmax(dim=1).
            if out_valid < y.shape[1]:
                lane = lax.broadcasted_iota(jnp.int32, y.shape, 1)
                y = jnp.where(lane < out_valid, y, _NEG_BIG)
            m = jnp.max(y, axis=1, keepdims=True)
            e = jnp.exp(y - m)                                  # EUP
            denom = jnp.sum(e, axis=1, keepdims=True)
            inv = 1.0 / denom    # exact reciprocal on one (TB,1) column only
            o_ref[...] = (e * inv).astype(o_ref.dtype)


def _param_spec(shape, single_buffer):
    """BlockSpec for a grid-invariant parameter block (constant index_map)."""
    if single_buffer and hasattr(pl, "Buffered"):
        # Constant index_map -> nothing to prefetch; single buffer halves
        # the parameter VMEM footprint (matters most on v7x / v5e).
        return pl.BlockSpec(shape, lambda i: (0, 0),
                            pipeline_mode=pl.Buffered(1))
    return pl.BlockSpec(shape, lambda i: (0, 0))


def _choose_tile(B, tile_batch):
    """Batch-tile size: as large as allowed, but leave >=2 grid steps when the
    batch is big enough so the "parallel" axis can span v7x's two TCs."""
    B_sub = _round_up(B, _SUBLANE)
    TB = min(tile_batch, B_sub)
    if B_sub <= TB and B_sub >= 2 * _SUBLANE:
        TB = _round_up(-(-B_sub // 2), _SUBLANE)
    return TB


@functools.partial(
    jax.jit,
    static_argnames=("activation", "output_size", "param_dtype",
                     "tile_batch", "single_buffer"))
def _forward_impl(x, padded_params, *, activation, output_size, param_dtype,
                  tile_batch, single_buffer):
    B, K0 = x.shape
    num_layers = len(padded_params)
    N_out_pad = padded_params[-1][0].shape[1]

    TB = _choose_tile(B, tile_batch)
    B_pad = _round_up(B, TB)
    if B_pad != B:
        # Batch-dim padding only; feature dim keeps its true width K0.
        x = jnp.pad(x, ((0, B_pad - B), (0, 0)))

    # x spec: last dim == full array dim (allowed even when not 128-aligned).
    in_specs = [pl.BlockSpec((TB, K0), lambda i: (i, 0))]
    flat_inputs = [x]
    for (w_p, b_p) in padded_params:
        in_specs.append(_param_spec(w_p.shape, single_buffer))
        in_specs.append(_param_spec(b_p.shape, single_buffer))
        flat_inputs.extend([w_p, b_p])
    out_spec = pl.BlockSpec((TB, N_out_pad), lambda i: (i, 0))

    # VMEM budget: params x buffer_count + pipelined x/out tiles + f32 temps.
    param_bytes = sum(
        int(w.size) * w.dtype.itemsize + int(b.size) * b.dtype.itemsize
        for w, b in padded_params)
    bufs = 1 if (single_buffer and hasattr(pl, "Buffered")) else 2
    max_w = max([w.shape[1] for w, _ in padded_params] + [K0])
    est = (param_bytes * bufs
           + 2 * TB * K0 * x.dtype.itemsize     # x tile, double-buffered
           + 2 * TB * N_out_pad * 4             # out tile, double-buffered
           + 4 * TB * max_w * 4)                # f32 activation temporaries
    vmem_limit = int(min(max(2 * est, 32 << 20), 64 << 20))

    kernel = functools.partial(
        _mlp_kernel, num_layers=num_layers, activation=activation,
        out_valid=output_size, param_dtype=param_dtype)

    out_p = pl.pallas_call(
        kernel,
        out_shape=jax.ShapeDtypeStruct((B_pad, N_out_pad), jnp.float32),
        grid=(B_pad // TB,),
        in_specs=in_specs,
        out_specs=out_spec,
        compiler_params=pltpu.CompilerParams(
            dimension_semantics=("parallel",),   # megacore / v7x batch split
            vmem_limit_bytes=vmem_limit),
    )(*flat_inputs)

    # Only the user-visible slice is narrow; the kernel stores lane-dense.
    return out_p[:B, :output_size]


_SINGLE_BUFFER_OK = True  # flipped to False if Buffered(1) specs fail to lower


def ann_forward_pallas(x, padded_params, *, activation, output_size,
                       param_dtype, tile_batch=512):
    """Run the whole fused MLP as a single (jit-wrapped) pallas_call."""
    global _SINGLE_BUFFER_OK
    kwargs = dict(activation=activation, output_size=output_size,
                  param_dtype=param_dtype, tile_batch=tile_batch)
    if _SINGLE_BUFFER_OK:
        try:
            return _forward_impl(x, tuple(padded_params),
                                 single_buffer=True, **kwargs)
        except Exception:
            # Older JAX without pipeline_mode / Buffered(1): retry with the
            # default double-buffered parameter specs.
            _SINGLE_BUFFER_OK = False
    return _forward_impl(x, tuple(padded_params),
                         single_buffer=False, **kwargs)


class ANNPallas:
    """JAX/Pallas port of the PyTorch ANN module (forward pass)."""

    def __init__(self, input_size, hidden_layer_sizes, output_size,
                 activation="relu", param_dtype=jnp.float32,
                 tile_batch=512, key=None):
        if key is None:
            key = jax.random.PRNGKey(0)
        self.activation = activation
        self.param_dtype = param_dtype
        self.tile_batch = tile_batch
        self.input_size = input_size
        self.output_size = output_size

        # Raw f32 parameters (reference semantics, nn.Linear-style init).
        self.params = []  # list of (W (in,out) f32, b (out,) f32)
        prev = input_size
        for size in list(hidden_layer_sizes) + [output_size]:
            key, kw, kb = jax.random.split(key, 3)
            bound = 1.0 / math.sqrt(prev)
            w = jax.random.uniform(kw, (prev, size), jnp.float32, -bound, bound)
            b = jax.random.uniform(kb, (size,), jnp.float32, -bound, bound)
            self.params.append((w, b))
            prev = size

        # Pre-pad parameters once. The FIRST layer keeps its true K (input)
        # width so x needs no feature-dim padding; all N dims (and later K
        # dims, which equal the previous layer's padded N) go to 128 lanes.
        # Biases stay f32 (added on the f32 accumulator).
        padded = []
        for li, (w, b) in enumerate(self.params):
            k, n = w.shape
            k_pad = k if li == 0 else _round_up(k, _LANE)
            n_pad = _round_up(n, _LANE)
            w_p = jnp.zeros((k_pad, n_pad), param_dtype).at[:k, :n].set(
                w.astype(param_dtype))
            b_p = jnp.zeros((1, n_pad), jnp.float32).at[0, :n].set(b)
            padded.append((w_p, b_p))
        self.padded = tuple(padded)

    def __call__(self, x):
        return ann_forward_pallas(
            x, self.padded, activation=self.activation,
            output_size=self.output_size, param_dtype=self.param_dtype,
            tile_batch=self.tile_batch)


def _reference_forward(params, x, activation):
    """Pure-JAX (f32) reference matching the PyTorch forward."""
    for w, b in params[:-1]:
        x = x @ w + b
        if activation == "relu":
            x = jnp.maximum(x, 0.0)
        elif activation == "tanh":
            x = jnp.tanh(x)
        elif activation == "sigmoid":
            x = jax.nn.sigmoid(x)
    w, b = params[-1]
    return jax.nn.softmax(x @ w + b, axis=1)


if __name__ == "__main__":
    key = jax.random.PRNGKey(0)
    key, kx1, kx2, kp = jax.random.split(key, 4)

    input_size = 32
    hidden_layer_sizes = [64, 48]
    output_size = 16

    # ---- Test 1: f32 params, small batch (single tile, single launch) ------
    batch = 8
    model = ANNPallas(input_size, hidden_layer_sizes, output_size,
                      activation="relu", param_dtype=jnp.float32, key=kp)
    x = jax.random.normal(kx1, (batch, input_size), dtype=jnp.float32)
    out = jax.block_until_ready(model(x))
    ref = _reference_forward(model.params, x, model.activation)
    assert out.shape == (batch, output_size)
    assert jnp.allclose(jnp.sum(out, axis=1), 1.0, atol=5e-3)
    assert jnp.allclose(out, ref, atol=5e-3, rtol=5e-3)

    # ---- Test 2: bf16 params, batch split into 2 "parallel" tiles ----------
    batch2 = 256
    model_bf16 = ANNPallas(input_size, hidden_layer_sizes, output_size,
                           activation="relu", param_dtype=jnp.bfloat16,
                           tile_batch=512, key=kp)
    x2 = jax.random.normal(kx2, (batch2, input_size), dtype=jnp.float32)
    out2 = jax.block_until_ready(model_bf16(x2))
    ref2 = _reference_forward(model_bf16.params, x2, model_bf16.activation)
    assert out2.shape == (batch2, output_size)
    assert jnp.allclose(jnp.sum(out2, axis=1), 1.0, atol=1e-2)
    assert jnp.allclose(out2, ref2, atol=5e-2, rtol=5e-2)

    print("KERNEL_OK")
</pallas_src>

<mosaic_0001>
module attributes {stable_mosaic.version = 11 : i64} {
  func.func @_mlp_kernel(%arg0: i32, %arg1: memref<8x32xf32, #tpu.memory_space<vmem>>, %arg2: memref<32x128xf32, #tpu.memory_space<vmem>>, %arg3: memref<1x128xf32, #tpu.memory_space<vmem>>, %arg4: memref<128x128xf32, #tpu.memory_space<vmem>>, %arg5: memref<1x128xf32, #tpu.memory_space<vmem>>, %arg6: memref<128x128xf32, #tpu.memory_space<vmem>>, %arg7: memref<1x128xf32, #tpu.memory_space<vmem>>, %arg8: memref<8x128xf32, #tpu.memory_space<vmem>>) attributes {dimension_semantics = [#tpu.dimension_semantics<parallel>], iteration_bounds = array<i64: 1>, scalar_prefetch = 0 : i64, scratch_operands = 0 : i64, tpu.core_type = #tpu.core_type<tc>, window_params = [{transform_indices = @transform_0, window_bounds = array<i64: 8, 32>}, {pipeline_mode = #tpu.pipeline_mode<synchronous>, transform_indices = @transform_1, window_bounds = array<i64: 32, 128>}, {pipeline_mode = #tpu.pipeline_mode<synchronous>, transform_indices = @transform_2, window_bounds = array<i64: 1, 128>}, {pipeline_mode = #tpu.pipeline_mode<synchronous>, transform_indices = @transform_3, window_bounds = array<i64: 128, 128>}, {pipeline_mode = #tpu.pipeline_mode<synchronous>, transform_indices = @transform_4, window_bounds = array<i64: 1, 128>}, {pipeline_mode = #tpu.pipeline_mode<synchronous>, transform_indices = @transform_5, window_bounds = array<i64: 128, 128>}, {pipeline_mode = #tpu.pipeline_mode<synchronous>, transform_indices = @transform_6, window_bounds = array<i64: 1, 128>}, {transform_indices = @transform_7, window_bounds = array<i64: 8, 128>}]} {
    %c0 = arith.constant 0 : index
    %c0_0 = arith.constant 0 : index
    %0 = vector.load %arg1[%c0, %c0_0] : memref<8x32xf32, #tpu.memory_space<vmem>>, vector<8x32xf32>
    %c0_1 = arith.constant 0 : index
    %c0_2 = arith.constant 0 : index
    %1 = vector.load %arg2[%c0_1, %c0_2] : memref<32x128xf32, #tpu.memory_space<vmem>>, vector<32x128xf32>
    %c0_3 = arith.constant 0 : index
    %c0_4 = arith.constant 0 : index
    %2 = vector.load %arg3[%c0_3, %c0_4] : memref<1x128xf32, #tpu.memory_space<vmem>>, vector<1x128xf32>
    %cst = arith.constant dense<0.000000e+00> : vector<8x128xf32>
    %3 = tpu.matmul %0, %1, %cst {dimension_numbers = #tpu.dot_dimension_numbers<[1], [0], [0], [1], [0, 0, 1, 1], [], []>} : vector<8x32xf32>, vector<32x128xf32>, vector<8x128xf32> -> vector<8x128xf32>
    %4 = vector.broadcast %2 : vector<1x128xf32> to vector<8x128xf32>
    %5 = arith.addf %3, %4 : vector<8x128xf32>
    %cst_5 = arith.constant 0.000000e+00 : f32
    %6 = vector.broadcast %cst_5 : f32 to vector<8x128xf32>
    %7 = arith.maximumf %5, %6 : vector<8x128xf32>
    %c0_6 = arith.constant 0 : index
    %c0_7 = arith.constant 0 : index
    %8 = vector.load %arg4[%c0_6, %c0_7] : memref<128x128xf32, #tpu.memory_space<vmem>>, vector<128x128xf32>
    %c0_8 = arith.constant 0 : index
    %c0_9 = arith.constant 0 : index
    %9 = vector.load %arg5[%c0_8, %c0_9] : memref<1x128xf32, #tpu.memory_space<vmem>>, vector<1x128xf32>
    %cst_10 = arith.constant dense<0.000000e+00> : vector<8x128xf32>
    %10 = tpu.matmul %7, %8, %cst_10 {dimension_numbers = #tpu.dot_dimension_numbers<[1], [0], [0], [1], [0, 0, 1, 1], [], []>} : vector<8x128xf32>, vector<128x128xf32>, vector<8x128xf32> -> vector<8x128xf32>
    %11 = vector.broadcast %9 : vector<1x128xf32> to vector<8x128xf32>
    %12 = arith.addf %10, %11 : vector<8x128xf32>
    %cst_11 = arith.constant 0.000000e+00 : f32
    %13 = vector.broadcast %cst_11 : f32 to vector<8x128xf32>
    %14 = arith.maximumf %12, %13 : vector<8x128xf32>
    %c0_12 = arith.constant 0 : index
    %c0_13 = arith.constant 0 : index
    %15 = vector.load %arg6[%c0_12, %c0_13] : memref<128x128xf32, #tpu.memory_space<vmem>>, vector<128x128xf32>
    %c0_14 = arith.constant 0 : index
    %c0_15 = arith.constant 0 : index
    %16 = vector.load %arg7[%c0_14, %c0_15] : memref<1x128xf32, #tpu.memory_space<vmem>>, vector<1x128xf32>
    %cst_16 = arith.constant dense<0.000000e+00> : vector<8x128xf32>
    %17 = tpu.matmul %14, %15, %cst_16 {dimension_numbers = #tpu.dot_dimension_numbers<[1], [0], [0], [1], [0, 0, 1, 1], [], []>} : vector<8x128xf32>, vector<128x128xf32>, vector<8x128xf32> -> vector<8x128xf32>
    %18 = vector.broadcast %16 : vector<1x128xf32> to vector<8x128xf32>
    %19 = arith.addf %17, %18 : vector<8x128xf32>
    %20 = tpu.iota {dimensions = array<i32: 1>} : vector<8x128xi32>
    %c16_i32 = arith.constant 16 : i32
    %21 = vector.broadcast %c16_i32 : i32 to vector<8x128xi32>
    %22 = arith.cmpi slt, %20, %21 : vector<8x128xi32>
    %cst_17 = arith.constant -1.000000e+30 : f32
    %23 = vector.broadcast %cst_17 : f32 to vector<8x128xf32>
    %24 = arith.select %22, %19, %23 : vector<8x128xi1>, vector<8x128xf32>
    %cst_18 = arith.constant dense<0xFF800000> : vector<8xf32>
    %25 = vector.multi_reduction <maximumf>, %24, %cst_18 [1] : vector<8x128xf32> to vector<8xf32>
    %26 = vector.shape_cast %25 : vector<8xf32> to vector<8x1xf32>
    %27 = vector.broadcast %26 : vector<8x1xf32> to vector<8x128xf32>
    %28 = arith.subf %24, %27 : vector<8x128xf32>
    %29 = math.exp %28 : vector<8x128xf32>
    %cst_19 = arith.constant dense<0.000000e+00> : vector<8xf32>
    %30 = vector.multi_reduction <add>, %29, %cst_19 [1] : vector<8x128xf32> to vector<8xf32>
    %31 = vector.shape_cast %30 : vector<8xf32> to vector<8x1xf32>
    %cst_20 = arith.constant 1.000000e+00 : f32
    %32 = vector.broadcast %cst_20 : f32 to vector<8x1xf32>
    %33 = arith.divf %32, %31 : vector<8x1xf32>
    %34 = vector.broadcast %33 : vector<8x1xf32> to vector<8x128xf32>
    %35 = arith.mulf %29, %34 : vector<8x128xf32>
    %c0_21 = arith.constant 0 : index
    %c0_22 = arith.constant 0 : index
    %36 = vector.load %arg8[%c0_21, %c0_22] : memref<8x128xf32, #tpu.memory_space<vmem>>, vector<8x128xf32>
    tpu.vector_store %arg8[%c0_21, %c0_22], %35 {strides = array<i32>} : memref<8x128xf32, #tpu.memory_space<vmem>>, vector<8x128xf32>,
    return
  }
  func.func @transform_0(%arg0: i32) -> (i32, i32) {
    %c0_i32 = arith.constant 0 : i32
    %c0_i32_0 = arith.constant 0 : i32
    return %arg0, %c0_i32 : i32, i32
  }
  func.func @transform_1(%arg0: i32) -> (i32, i32) {
    %c0_i32 = arith.constant 0 : i32
    %c0_i32_0 = arith.constant 0 : i32
    %c0_i32_1 = arith.constant 0 : i32
    return %c0_i32, %c0_i32_0 : i32, i32
  }
  func.func @transform_2(%arg0: i32) -> (i32, i32) {
    %c0_i32 = arith.constant 0 : i32
    %c0_i32_0 = arith.constant 0 : i32
    %c0_i32_1 = arith.constant 0 : i32
    return %c0_i32, %c0_i32_0 : i32, i32
  }
  func.func @transform_3(%arg0: i32) -> (i32, i32) {
    %c0_i32 = arith.constant 0 : i32
    %c0_i32_0 = arith.constant 0 : i32
    %c0_i32_1 = arith.constant 0 : i32
    return %c0_i32, %c0_i32_0 : i32, i32
  }
  func.func @transform_4(%arg0: i32) -> (i32, i32) {
    %c0_i32 = arith.constant 0 : i32
    %c0_i32_0 = arith.constant 0 : i32
    %c0_i32_1 = arith.constant 0 : i32
    return %c0_i32, %c0_i32_0 : i32, i32
  }
  func.func @transform_5(%arg0: i32) -> (i32, i32) {
    %c0_i32 = arith.constant 0 : i32
    %c0_i32_0 = arith.constant 0 : i32
    %c0_i32_1 = arith.constant 0 : i32
    return %c0_i32, %c0_i32_0 : i32, i32
  }
  func.func @transform_6(%arg0: i32) -> (i32, i32) {
    %c0_i32 = arith.constant 0 : i32
    %c0_i32_0 = arith.constant 0 : i32
    %c0_i32_1 = arith.constant 0 : i32
    return %c0_i32, %c0_i32_0 : i32, i32
  }
  func.func @transform_7(%arg0: i32) -> (i32, i32) {
    %c0_i32 = arith.constant 0 : i32
    %c0_i32_0 = arith.constant 0 : i32
    return %arg0, %c0_i32 : i32, i32
  }
}

module attributes {stable_mosaic.version = 11 : i64} {
  func.func @_mlp_kernel(%arg0: i32, %arg1: memref<8x32xf32, #tpu.memory_space<vmem>>, %arg2: memref<32x128xf32, #tpu.memory_space<vmem>>, %arg3: memref<1x128xf32, #tpu.memory_space<vmem>>, %arg4: memref<128x128xf32, #tpu.memory_space<vmem>>, %arg5: memref<1x128xf32, #tpu.memory_space<vmem>>, %arg6: memref<128x128xf32, #tpu.memory_space<vmem>>, %arg7: memref<1x128xf32, #tpu.memory_space<vmem>>, %arg8: memref<8x128xf32, #tpu.memory_space<vmem>>) attributes {dimension_semantics = [#tpu.dimension_semantics<parallel>], iteration_bounds = array<i64: 1>, scalar_prefetch = 0 : i64, scratch_operands = 0 : i64, tpu.core_type = #tpu.core_type<tc>, window_params = [{transform_indices = @transform_0, window_bounds = array<i64: 8, 32>}, {pipeline_mode = #tpu.pipeline_mode<synchronous>, transform_indices = @transform_1, window_bounds = array<i64: 32, 128>}, {pipeline_mode = #tpu.pipeline_mode<synchronous>, transform_indices = @transform_2, window_bounds = array<i64: 1, 128>}, {pipeline_mode = #tpu.pipeline_mode<synchronous>, transform_indices = @transform_3, window_bounds = array<i64: 128, 128>}, {pipeline_mode = #tpu.pipeline_mode<synchronous>, transform_indices = @transform_4, window_bounds = array<i64: 1, 128>}, {pipeline_mode = #tpu.pipeline_mode<synchronous>, transform_indices = @transform_5, window_bounds = array<i64: 128, 128>}, {pipeline_mode = #tpu.pipeline_mode<synchronous>, transform_indices = @transform_6, window_bounds = array<i64: 1, 128>}, {transform_indices = @transform_7, window_bounds = array<i64: 8, 128>}]} {
    %c0 = arith.constant 0 : index
    %c0_0 = arith.constant 0 : index
    %0 = vector.load %arg1[%c0, %c0_0] : memref<8x32xf32, #tpu.memory_space<vmem>>, vector<8x32xf32>
    %c0_1 = arith.constant 0 : index
    %c0_2 = arith.constant 0 : index
    %1 = vector.load %arg2[%c0_1, %c0_2] : memref<32x128xf32, #tpu.memory_space<vmem>>, vector<32x128xf32>
    %c0_3 = arith.constant 0 : index
    %c0_4 = arith.constant 0 : index
    %2 = vector.load %arg3[%c0_3, %c0_4] : memref<1x128xf32, #tpu.memory_space<vmem>>, vector<1x128xf32>
    %cst = arith.constant dense<0.000000e+00> : vector<8x128xf32>
    %3 = tpu.matmul %0, %1, %cst {dimension_numbers = #tpu.dot_dimension_numbers<[1], [0], [0], [1], [0, 0, 1, 1], [], []>} : vector<8x32xf32>, vector<32x128xf32>, vector<8x128xf32> -> vector<8x128xf32>
    %4 = vector.broadcast %2 : vector<1x128xf32> to vector<8x128xf32>
    %5 = arith.addf %3, %4 : vector<8x128xf32>
    %cst_5 = arith.constant 0.000000e+00 : f32
    %6 = vector.broadcast %cst_5 : f32 to vector<8x128xf32>
    %7 = arith.maximumf %5, %6 : vector<8x128xf32>
    %c0_6 = arith.constant 0 : index
    %c0_7 = arith.constant 0 : index
    %8 = vector.load %arg4[%c0_6, %c0_7] : memref<128x128xf32, #tpu.memory_space<vmem>>, vector<128x128xf32>
    %c0_8 = arith.constant 0 : index
    %c0_9 = arith.constant 0 : index
    %9 = vector.load %arg5[%c0_8, %c0_9] : memref<1x128xf32, #tpu.memory_space<vmem>>, vector<1x128xf32>
    %cst_10 = arith.constant dense<0.000000e+00> : vector<8x128xf32>
    %10 = tpu.matmul %7, %8, %cst_10 {dimension_numbers = #tpu.dot_dimension_numbers<[1], [0], [0], [1], [0, 0, 1, 1], [], []>} : vector<8x128xf32>, vector<128x128xf32>, vector<8x128xf32> -> vector<8x128xf32>
    %11 = vector.broadcast %9 : vector<1x128xf32> to vector<8x128xf32>
    %12 = arith.addf %10, %11 : vector<8x128xf32>
    %cst_11 = arith.constant 0.000000e+00 : f32
    %13 = vector.broadcast %cst_11 : f32 to vector<8x128xf32>
    %14 = arith.maximumf %12, %13 : vector<8x128xf32>
    %c0_12 = arith.constant 0 : index
    %c0_13 = arith.constant 0 : index
    %15 = vector.load %arg6[%c0_12, %c0_13] : memref<128x128xf32, #tpu.memory_space<vmem>>, vector<128x128xf32>
    %c0_14 = arith.constant 0 : index
    %c0_15 = arith.constant 0 : index
    %16 = vector.load %arg7[%c0_14, %c0_15] : memref<1x128xf32, #tpu.memory_space<vmem>>, vector<1x128xf32>
    %cst_16 = arith.constant dense<0.000000e+00> : vector<8x128xf32>
    %17 = tpu.matmul %14, %15, %cst_16 {dimension_numbers = #tpu.dot_dimension_numbers<[1], [0], [0], [1], [0, 0, 1, 1], [], []>} : vector<8x128xf32>, vector<128x128xf32>, vector<8x128xf32> -> vector<8x128xf32>
    %18 = vector.broadcast %16 : vector<1x128xf32> to vector<8x128xf32>
    %19 = arith.addf %17, %18 : vector<8x128xf32>
    %20 = tpu.iota {dimensions = array<i32: 1>} : vector<8x128xi32>
    %c16_i32 = arith.constant 16 : i32
    %21 = vector.broadcast %c16_i32 : i32 to vector<8x128xi32>
    %22 = arith.cmpi slt, %20, %21 : vector<8x128xi32>
    %cst_17 = arith.constant -1.000000e+30 : f32
    %23 = vector.broadcast %cst_17 : f32 to vector<8x128xf32>
    %24 = arith.select %22, %19, %23 : vector<8x128xi1>, vector<8x128xf32>
    %cst_18 = arith.constant dense<0xFF800000> : vector<8xf32>
    %25 = vector.multi_reduction <maximumf>, %24, %cst_18 [1] : vector<8x128xf32> to vector<8xf32>
    %26 = vector.shape_cast %25 : vector<8xf32> to vector<8x1xf32>
    %27 = vector.broadcast %26 : vector<8x1xf32> to vector<8x128xf32>
    %28 = arith.subf %24, %27 : vector<8x128xf32>
    %29 = math.exp %28 : vector<8x128xf32>
    %cst_19 = arith.constant dense<0.000000e+00> : vector<8xf32>
    %30 = vector.multi_reduction <add>, %29, %cst_19 [1] : vector<8x128xf32> to vector<8xf32>
    %31 = vector.shape_cast %30 : vector<8xf32> to vector<8x1xf32>
    %cst_20 = arith.constant 1.000000e+00 : f32
    %32 = vector.broadcast %cst_20 : f32 to vector<8x1xf32>
    %33 = arith.divf %32, %31 : vector<8x1xf32>
    %34 = vector.broadcast %33 : vector<8x1xf32> to vector<8x128xf32>
    %35 = arith.mulf %29, %34 : vector<8x128xf32>
    %c0_21 = arith.constant 0 : index
    %c0_22 = arith.constant 0 : index
    %36 = vector.load %arg8[%c0_21, %c0_22] : memref<8x128xf32, #tpu.memory_space<vmem>>, vector<8x128xf32>
    tpu.vector_store %arg8[%c0_21, %c0_22], %35 {strides = array<i32>} : memref<8x128xf32, #tpu.memory_space<vmem>>, vector<8x128xf32>,
    return
  }
  func.func @transform_0(%arg0: i32) -> (i32, i32) {
    %c0_i32 = arith.constant 0 : i32
    %c0_i32_0 = arith.constant 0 : i32
    return %arg0, %c0_i32 : i32, i32
  }
  func.func @transform_1(%arg0: i32) -> (i32, i32) {
    %c0_i32 = arith.constant 0 : i32
    %c0_i32_0 = arith.constant 0 : i32
    %c0_i32_1 = arith.constant 0 : i32
    return %c0_i32, %c0_i32_0 : i32, i32
  }
  func.func @transform_2(%arg0: i32) -> (i32, i32) {
    %c0_i32 = arith.constant 0 : i32
    %c0_i32_0 = arith.constant 0 : i32
    %c0_i32_1 = arith.constant 0 : i32
    return %c0_i32, %c0_i32_0 : i32, i32
  }
  func.func @transform_3(%arg0: i32) -> (i32, i32) {
    %c0_i32 = arith.constant 0 : i32
    %c0_i32_0 = arith.constant 0 : i32
    %c0_i32_1 = arith.constant 0 : i32
    return %c0_i32, %c0_i32_0 : i32, i32
  }
  func.func @transform_4(%arg0: i32) -> (i32, i32) {
    %c0_i32 = arith.constant 0 : i32
    %c0_i32_0 = arith.constant 0 : i32
    %c0_i32_1 = arith.constant 0 : i32
    return %c0_i32, %c0_i32_0 : i32, i32
  }
  func.func @transform_5(%arg0: i32) -> (i32, i32) {
    %c0_i32 = arith.constant 0 : i32
    %c0_i32_0 = arith.constant 0 : i32
    %c0_i32_1 = arith.constant 0 : i32
    return %c0_i32, %c0_i32_0 : i32, i32
  }
  func.func @transform_6(%arg0: i32) -> (i32, i32) {
    %c0_i32 = arith.constant 0 : i32
    %c0_i32_0 = arith.constant 0 : i32
    %c0_i32_1 = arith.constant 0 : i32
    return %c0_i32, %c0_i32_0 : i32, i32
  }
  func.func @transform_7(%arg0: i32) -> (i32, i32) {
    %c0_i32 = arith.constant 0 : i32
    %c0_i32_0 = arith.constant 0 : i32
    return %arg0, %c0_i32 : i32, i32
  }
}

</mosaic_0001>

<llo_original>
// kernel: _forward_impl.1
$region0: #{_forward_impl.1}
  #allocation0 [shape = 'u32[]', space=smem, size = 0x4, offset = 0x4, fixed_abs, tag = 'smem constant byte address 0x4 - core index']
  #allocation1 [shape = 'u32[144,128]{1,0:T(1,128)}', space=vmem, size = 0x12000, scoped, tag = 'internal scratch']
  %s0 = inlined_call_operand.hbm [shape: f32[8,32], index: 0, kind: input, shape index: {}]
  %s1 = inlined_call_operand.hbm [shape: f32[32,128], index: 1, kind: input, shape index: {}]
  %s2 = inlined_call_operand.vmem [shape: f32[1,128], index: 2, kind: input, shape index: {}]
  %s3 = inlined_call_operand.hbm [shape: f32[128,128], index: 3, kind: input, shape index: {}]
  %s4 = inlined_call_operand.vmem [shape: f32[1,128], index: 4, kind: input, shape index: {}]
  %s5 = inlined_call_operand.hbm [shape: f32[128,128], index: 5, kind: input, shape index: {}]
  %s6 = inlined_call_operand.vmem [shape: f32[1,128], index: 6, kind: input, shape index: {}]
  %s7 = inlined_call_operand.hbm [shape: f32[8,128], index: 7, kind: output, shape index: {}]
  %s8 = sld [smem:[#allocation0]]
  $region54: #{_forward_impl.1} parent=0
    _
  %s10 = ssub.s32 1, %s8
  %s11 = scalar_select 0, %s10, %s8
  $region1: #{_forward_impl.1} parent=0
    #allocation2 [shape = 'u8[4096]{0}', space=vmem, size = 0x1000, scoped, tag = 'input window, operand 0, single buffered']
    #allocation3 [shape = 's32[1]{0}', space=sflag, size = 0x4, scoped, tag = 'scoped memory for _forward_impl.1']
    #allocation4 [shape = 's32[1]{0}', space=sflag, size = 0x4, scoped, tag = 'scoped memory for _forward_impl.1']
    #allocation5 [shape = 'u8[16384]{0}', space=vmem, size = 0x4000, scoped, tag = 'input window, operand 1, single buffered']
    #allocation6 [shape = 's32[1]{0}', space=sflag, size = 0x4, scoped, tag = 'scoped memory for _forward_impl.1']
    #allocation7 [shape = 'u8[65536]{0}', space=vmem, size = 0x10000, scoped, tag = 'input window, operand 3, single buffered']
    #allocation8 [shape = 'u8[65536]{0}', space=vmem, size = 0x10000, scoped, tag = 'input window, operand 5, single buffered']
    #allocation9 [shape = 's32[1]{0}', space=sflag, size = 0x4, scoped, tag = 'scoped memory for _forward_impl.1']
    #allocation10 [shape = 'u8[4096]{0}', space=vmem, size = 0x1000, scoped, tag = 'output window, operand 0, single buffered']
    %12 = vsyncpa [#allocation3], 0
    %13 = vsyncpa [#allocation6], 0
    %14 = vsyncpa [#allocation9], 0
    %15 = vsyncpa [#allocation4], 0
    // Predicated region
    $region2: #{_forward_impl.1} parent=1 // pred_check
      _
    $region3: #{_forward_impl.1} parent=1 // pred_check_branch
      %17 = sbr.rel (0) target = $region5
    $region4: #{_forward_impl.1} parent=1 // pred_region
      %s19 = ssub.s32 128, 128
      %20 = vsyncadd [#allocation3], %s19
      %s22 = sshll.u32 [#allocation2], 4
      %s23 = int_to_ptr.vmem [resolvable:$true] %s22
      %25 = dma.hbm_to_vmem [thread:$0]  %s0, 128, %s23, [#allocation3]
    $region5: #{_forward_impl.1} parent=1 // pred_fallthru
      _
    // Predicated region
    $region6: #{_forward_impl.1} parent=1 // pred_check
      _
    $region7: #{_forward_impl.1} parent=1 // pred_check_branch
      %27 = sbr.rel (0) target = $region9
    $region8: #{_forward_impl.1} parent=1 // pred_region
      %s29 = ssub.s32 512, 512
      %30 = vsyncadd [#allocation6], %s29
      %s31 = sshll.u32 [#allocation5], 4
      %s32 = int_to_ptr.vmem [resolvable:$true] %s31
      %37 = dma.hbm_to_vmem [thread:$0]  %s1, 512, %s32, [#allocation6], 128, 128, 8
    $region9: #{_forward_impl.1} parent=1 // pred_fallthru
      _
    // Predicated region
    $region10: #{_forward_impl.1} parent=1 // pred_check
      _
    $region11: #{_forward_impl.1} parent=1 // pred_check_branch
      %39 = sbr.rel (0) target = $region13
    $region12: #{_forward_impl.1} parent=1 // pred_region
      _
    $region13: #{_forward_impl.1} parent=1 // pred_fallthru
      _
    // Predicated region
    $region14: #{_forward_impl.1} parent=1 // pred_check
      _
    $region15: #{_forward_impl.1} parent=1 // pred_check_branch
      %41 = sbr.rel (0) target = $region17
    $region16: #{_forward_impl.1} parent=1 // pred_region
      %s43 = ssub.s32 2048, 2048
      %44 = vsyncadd [#allocation6], %s43
      %s45 = sshll.u32 [#allocation7], 4
      %s46 = int_to_ptr.vmem [resolvable:$true] %s45
      %51 = dma.hbm_to_vmem [thread:$0]  %s3, 2048, %s46, [#allocation6], 128, 128, 8
    $region17: #{_forward_impl.1} parent=1 // pred_fallthru
      _
    // Predicated region
    $region18: #{_forward_impl.1} parent=1 // pred_check
      _
    $region19: #{_forward_impl.1} parent=1 // pred_check_branch
      %53 = sbr.rel (0) target = $region21
    $region20: #{_forward_impl.1} parent=1 // pred_region
      _
    $region21: #{_forward_impl.1} parent=1 // pred_fallthru
      _
    // Predicated region
    $region22: #{_forward_impl.1} parent=1 // pred_check
      _
    $region23: #{_forward_impl.1} parent=1 // pred_check_branch
      %55 = sbr.rel (0) target = $region25
    $region24: #{_forward_impl.1} parent=1 // pred_region
      %s57 = ssub.s32 2048, 2048
      %58 = vsyncadd [#allocation9], %s57
      %s59 = sshll.u32 [#allocation8], 4
      %s60 = int_to_ptr.vmem [resolvable:$true] %s59
      %65 = dma.hbm_to_vmem [thread:$0]  %s5, 2048, %s60, [#allocation9], 128, 128, 8
    $region25: #{_forward_impl.1} parent=1 // pred_fallthru
      _
    // Predicated region
    $region26: #{_forward_impl.1} parent=1 // pred_check
      _
    $region27: #{_forward_impl.1} parent=1 // pred_check_branch
      %67 = sbr.rel (0) target = $region29
    $region28: #{_forward_impl.1} parent=1 // pred_region
      _
    $region29: #{_forward_impl.1} parent=1 // pred_fallthru
      _
    // Predicated region
    $region30: #{_forward_impl.1} parent=1 // pred_check
      _
    $region31: #{_forward_impl.1} parent=1 // pred_check_branch
      %69 = sbr.rel (0) target = $region33
    $region32: #{_forward_impl.1} parent=1 // pred_region
      %70 = dma.done [#allocation3], 128
    $region33: #{_forward_impl.1} parent=1 // pred_fallthru
      _
    // Predicated region
    $region34: #{_forward_impl.1} parent=1 // pred_check
      _
    $region35: #{_forward_impl.1} parent=1 // pred_check_branch
      %72 = sbr.rel (0) target = $region37
    $region36: #{_forward_impl.1} parent=1 // pred_region
      %73 = dma.done [#allocation6], 512
    $region37: #{_forward_impl.1} parent=1 // pred_fallthru
      _
    // Predicated region
    $region38: #{_forward_impl.1} parent=1 // pred_check
      _
    $region39: #{_forward_impl.1} parent=1 // pred_check_branch
      %75 = sbr.rel (0) target = $region41
    $region40: #{_forward_impl.1} parent=1 // pred_region
      %76 = dma.done [#allocation6], 2048
    $region41: #{_forward_impl.1} parent=1 // pred_fallthru
      _
    // Predicated region
    $region42: #{_forward_impl.1} parent=1 // pred_check
      _
    $region43: #{_forward_impl.1} parent=1 // pred_check_branch
      %78 = sbr.rel (0) target = $region45
    $region44: #{_forward_impl.1} parent=1 // pred_region
      %79 = dma.done [#allocation9], 2048
    $region45: #{_forward_impl.1} parent=1 // pred_fallthru
      _
    %v80 = vld [vmem:[#allocation2] sm:$0xff]
    %v81 = vld [vmem:[#allocation5] sm:$0xff]
    %v82 = vld [vmem:[#allocation5 + $0x8] sm:$0xff]
    %v83 = vld [vmem:[#allocation5 + $0x10] sm:$0xff]
    %v84 = vld [vmem:[#allocation5 + $0x18] sm:$0xff]
    %v85 = vld [vmem:[%s2] sm:$0x1]
    %v87 = vlaneseq
    %v88 = vshrl.u32 %v87, 7
    %v89 = vsub.s32 0, %v88
    %v90 = vrot.slane %v85, %v89
    %vm92 = vcmask 261120
    %v94 = vsel %vm92, %v80, 0
    %96 = vmatprep.subr.mxu0 0.0
    %97 = vmatpush1.msra.mxu0 %v81
    %98 = vmatprep.subr.mxu0 0.0
    %99 = vmatpush1.msra.mxu0 %v82
    %100 = vmatprep.subr.mxu0 0.0
    %101 = vmatpush1.msra.mxu0 %v83
    %102 = vmatprep.subr.mxu0 0.0
    %103 = vmatpush1.msra.mxu0 %v84
    %104 = vmatprep.subr.mxu0 0.0
    %105 = vmatpush1.msra.mxu0 0.0
    %106 = vmatprep.subr.mxu0 0.0
    %107 = vmatpush1.msra.mxu0 0.0
    %108 = vmatprep.subr.mxu0 0.0
    %109 = vmatpush1.msra.mxu0 0.0
    %110 = vmatprep.subr.mxu0 0.0
    %111 = vmatpush1.msra.mxu0 0.0
    %112 = vmatprep.subr.mxu0 0.0
    %113 = vmatpush1.msra.mxu0 0.0
    %114 = vmatprep.subr.mxu0 0.0
    %115 = vmatpush1.msra.mxu0 0.0
    %116 = vmatprep.subr.mxu0 0.0
    %117 = vmatpush1.msra.mxu0 0.0
    %118 = vmatprep.subr.mxu0 0.0
    %119 = vmatpush1.msra.mxu0 0.0
    %120 = vmatprep.subr.mxu0 0.0
    %121 = vmatpush1.msra.mxu0 0.0
    %122 = vmatprep.subr.mxu0 0.0
    %123 = vmatpush1.msra.mxu0 0.0
    %124 = vmatprep.subr.mxu0 0.0
    %125 = vmatpush1.msra.mxu0 0.0
    %126 = vmatprep.subr.mxu0 0.0
    %127 = vmatpush1.msra.mxu0 0.0
    %128 = vmatprep.subr.mxu0 0.0
    %129 = vmatpush1.msra.mxu0 0.0
    %130 = vmatprep.subr.mxu0 0.0
    %131 = vmatpush1.msra.mxu0 0.0
    %132 = vmatprep.subr.mxu0 0.0
    %133 = vmatpush1.msra.mxu0 0.0
    %134 = vmatprep.subr.mxu0 0.0
    %135 = vmatpush1.msra.mxu0 0.0
    %136 = vmatprep.subr.mxu0 0.0
    %137 = vmatpush1.msra.mxu0 0.0
    %138 = vmatprep.subr.mxu0 0.0
    %139 = vmatpush1.msra.mxu0 0.0
    %140 = vmatprep.subr.mxu0 0.0
    %141 = vmatpush1.msra.mxu0 0.0
    %142 = vmatprep.subr.mxu0 0.0
    %143 = vmatpush1.msra.mxu0 0.0
    %144 = vmatprep.subr.mxu0 0.0
    %145 = vmatpush1.msra.mxu0 0.0
    %146 = vmatprep.subr.mxu0 0.0
    %147 = vmatpush1.msra.mxu0 0.0
    %148 = vmatprep.subr.mxu0 0.0
    %149 = vmatpush1.msra.mxu0 0.0
    %150 = vmatprep.subr.mxu0 0.0
    %151 = vmatpush1.msra.mxu0 0.0
    %152 = vmatprep.subr.mxu0 0.0
    %153 = vmatpush1.msra.mxu0 0.0
    %154 = vmatprep.subr.mxu0 0.0
    %155 = vmatpush1.msra.mxu0 0.0
    %156 = vmatprep.subr.mxu0 0.0
    %157 = vmatpush1.msra.mxu0 0.0
    %158 = vmatprep.subr.mxu0 0.0
    %159 = vmatpush1.msra.mxu0 0.0
    %160 = vmatprep.mubr.f32.mxu0 0.0
    %161 = vmatmul.mubr.f32.gmra.mrb[0].mxu0 %v94
    %v162 = vpop.f32.mrb[0].mxu0
    %v163 = vadd.f32 %v90, %v162
    %v164 = vpop.f32.mrb[0].mxu0
    %165 = vdwg.mxu0
    %v166 = vmax.f32 %v163, 0.0
    %v167 = vld [vmem:[#allocation7] sm:$0xff]
    %v168 = vld [vmem:[#allocation7 + $0x8] sm:$0xff]
    %v169 = vld [vmem:[#allocation7 + $0x10] sm:$0xff]
    %v170 = vld [vmem:[#allocation7 + $0x18] sm:$0xff]
    %v171 = vld [vmem:[#allocation7 + $0x20] sm:$0xff]
    %v172 = vld [vmem:[#allocation7 + $0x28] sm:$0xff]
    %v173 = vld [vmem:[#allocation7 + $0x30] sm:$0xff]
    %v174 = vld [vmem:[#allocation7 + $0x38] sm:$0xff]
    %v175 = vld [vmem:[#allocation7 + $0x40] sm:$0xff]
    %v176 = vld [vmem:[#allocation7 + $0x48] sm:$0xff]
    %v177 = vld [vmem:[#allocation7 + $0x50] sm:$0xff]
    %v178 = vld [vmem:[#allocation7 + $0x58] sm:$0xff]
    %v179 = vld [vmem:[#allocation7 + $0x60] sm:$0xff]
    %v180 = vld [vmem:[#allocation7 + $0x68] sm:$0xff]
    %v181 = vld [vmem:[#allocation7 + $0x70] sm:$0xff]
    %v182 = vld [vmem:[#allocation7 + $0x78] sm:$0xff]
    %v183 = vld [vmem:[%s4] sm:$0x1]
    %v185 = vlaneseq
    %v186 = vshrl.u32 %v185, 7
    %v187 = vsub.s32 0, %v186
    %v188 = vrot.slane %v183, %v187
    %190 = vmatprep.subr.mxu0 0.0
    %191 = vmatpush1.msra.mxu0 %v167
    %192 = vmatprep.subr.mxu0 0.0
    %193 = vmatpush1.msra.mxu0 %v168
    %194 = vmatprep.subr.mxu0 0.0
    %195 = vmatpush1.msra.mxu0 %v169
    %196 = vmatprep.subr.mxu0 0.0
    %197 = vmatpush1.msra.mxu0 %v170
    %198 = vmatprep.subr.mxu0 0.0
    %199 = vmatpush1.msra.mxu0 %v171
    %200 = vmatprep.subr.mxu0 0.0
    %201 = vmatpush1.msra.mxu0 %v172
    %202 = vmatprep.subr.mxu0 0.0
    %203 = vmatpush1.msra.mxu0 %v173
    %204 = vmatprep.subr.mxu0 0.0
    %205 = vmatpush1.msra.mxu0 %v174
    %206 = vmatprep.subr.mxu0 0.0
    %207 = vmatpush1.msra.mxu0 %v175
    %208 = vmatprep.subr.mxu0 0.0
    %209 = vmatpush1.msra.mxu0 %v176
    %210 = vmatprep.subr.mxu0 0.0
    %211 = vmatpush1.msra.mxu0 %v177
    %212 = vmatprep.subr.mxu0 0.0
    %213 = vmatpush1.msra.mxu0 %v178
    %214 = vmatprep.subr.mxu0 0.0
    %215 = vmatpush1.msra.mxu0 %v179
    %216 = vmatprep.subr.mxu0 0.0
    %217 = vmatpush1.msra.mxu0 %v180
    %218 = vmatprep.subr.mxu0 0.0
    %219 = vmatpush1.msra.mxu0 %v181
    %220 = vmatprep.subr.mxu0 0.0
    %221 = vmatpush1.msra.mxu0 %v182
    %222 = vmatprep.subr.mxu0 0.0
    %223 = vmatpush1.msra.mxu0 0.0
    %224 = vmatprep.subr.mxu0 0.0
    %225 = vmatpush1.msra.mxu0 0.0
    %226 = vmatprep.subr.mxu0 0.0
    %227 = vmatpush1.msra.mxu0 0.0
    %228 = vmatprep.subr.mxu0 0.0
    %229 = vmatpush1.msra.mxu0 0.0
    %230 = vmatprep.subr.mxu0 0.0
    %231 = vmatpush1.msra.mxu0 0.0
    %232 = vmatprep.subr.mxu0 0.0
    %233 = vmatpush1.msra.mxu0 0.0
    %234 = vmatprep.subr.mxu0 0.0
    %235 = vmatpush1.msra.mxu0 0.0
    %236 = vmatprep.subr.mxu0 0.0
    %237 = vmatpush1.msra.mxu0 0.0
    %238 = vmatprep.subr.mxu0 0.0
    %239 = vmatpush1.msra.mxu0 0.0
    %240 = vmatprep.subr.mxu0 0.0
    %241 = vmatpush1.msra.mxu0 0.0
    %242 = vmatprep.subr.mxu0 0.0
    %243 = vmatpush1.msra.mxu0 0.0
    %244 = vmatprep.subr.mxu0 0.0
    %245 = vmatpush1.msra.mxu0 0.0
    %246 = vmatprep.subr.mxu0 0.0
    %247 = vmatpush1.msra.mxu0 0.0
    %248 = vmatprep.subr.mxu0 0.0
    %249 = vmatpush1.msra.mxu0 0.0
    %250 = vmatprep.subr.mxu0 0.0
    %251 = vmatpush1.msra.mxu0 0.0
    %252 = vmatprep.subr.mxu0 0.0
    %253 = vmatpush1.msra.mxu0 0.0
    %254 = vmatprep.mubr.f32.mxu0 0.0
    %255 = vmatmul.mubr.f32.gmra.mrb[0].mxu0 %v166
    %v256 = vpop.f32.mrb[0].mxu0
    %v257 = vadd.f32 %v188, %v256
    %v258 = vpop.f32.mrb[0].mxu0
    %259 = vdwg.mxu0
    %v260 = vmax.f32 %v257, 0.0
    %v261 = vld [vmem:[#allocation8] sm:$0xff]
    %v262 = vld [vmem:[#allocation8 + $0x8] sm:$0xff]
    %v263 = vld [vmem:[#allocation8 + $0x10] sm:$0xff]
    %v264 = vld [vmem:[#allocation8 + $0x18] sm:$0xff]
    %v265 = vld [vmem:[#allocation8 + $0x20] sm:$0xff]
    %v266 = vld [vmem:[#allocation8 + $0x28] sm:$0xff]
    %v267 = vld [vmem:[#allocation8 + $0x30] sm:$0xff]
    %v268 = vld [vmem:[#allocation8 + $0x38] sm:$0xff]
    %v269 = vld [vmem:[#allocation8 + $0x40] sm:$0xff]
    %v270 = vld [vmem:[#allocation8 + $0x48] sm:$0xff]
    %v271 = vld [vmem:[#allocation8 + $0x50] sm:$0xff]
    %v272 = vld [vmem:[#allocation8 + $0x58] sm:$0xff]
    %v273 = vld [vmem:[#allocation8 + $0x60] sm:$0xff]
    %v274 = vld [vmem:[#allocation8 + $0x68] sm:$0xff]
    %v275 = vld [vmem:[#allocation8 + $0x70] sm:$0xff]
    %v276 = vld [vmem:[#allocation8 + $0x78] sm:$0xff]
    %v277 = vld [vmem:[%s6] sm:$0x1]
    %v279 = vlaneseq
    %v280 = vshrl.u32 %v279, 7
    %v281 = vsub.s32 0, %v280
    %v282 = vrot.slane %v277, %v281
    %284 = vmatprep.subr.mxu0 0.0
    %285 = vmatpush1.msra.mxu0 %v261
    %286 = vmatprep.subr.mxu0 0.0
    %287 = vmatpush1.msra.mxu0 %v262
    %288 = vmatprep.subr.mxu0 0.0
    %289 = vmatpush1.msra.mxu0 %v263
    %290 = vmatprep.subr.mxu0 0.0
    %291 = vmatpush1.msra.mxu0 %v264
    %292 = vmatprep.subr.mxu0 0.0
    %293 = vmatpush1.msra.mxu0 %v265
    %294 = vmatprep.subr.mxu0 0.0
    %295 = vmatpush1.msra.mxu0 %v266
    %296 = vmatprep.subr.mxu0 0.0
    %297 = vmatpush1.msra.mxu0 %v267
    %298 = vmatprep.subr.mxu0 0.0
    %299 = vmatpush1.msra.mxu0 %v268
    %300 = vmatprep.subr.mxu0 0.0
    %301 = vmatpush1.msra.mxu0 %v269
    %302 = vmatprep.subr.mxu0 0.0
    %303 = vmatpush1.msra.mxu0 %v270
    %304 = vmatprep.subr.mxu0 0.0
    %305 = vmatpush1.msra.mxu0 %v271
    %306 = vmatprep.subr.mxu0 0.0
    %307 = vmatpush1.msra.mxu0 %v272
    %308 = vmatprep.subr.mxu0 0.0
    %309 = vmatpush1.msra.mxu0 %v273
    %310 = vmatprep.subr.mxu0 0.0
    %311 = vmatpush1.msra.mxu0 %v274
    %312 = vmatprep.subr.mxu0 0.0
    %313 = vmatpush1.msra.mxu0 %v275
    %314 = vmatprep.subr.mxu0 0.0
    %315 = vmatpush1.msra.mxu0 %v276
    %316 = vmatprep.subr.mxu0 0.0
    %317 = vmatpush1.msra.mxu0 0.0
    %318 = vmatprep.subr.mxu0 0.0
    %319 = vmatpush1.msra.mxu0 0.0
    %320 = vmatprep.subr.mxu0 0.0
    %321 = vmatpush1.msra.mxu0 0.0
    %322 = vmatprep.subr.mxu0 0.0
    %323 = vmatpush1.msra.mxu0 0.0
    %324 = vmatprep.subr.mxu0 0.0
    %325 = vmatpush1.msra.mxu0 0.0
    %326 = vmatprep.subr.mxu0 0.0
    %327 = vmatpush1.msra.mxu0 0.0
    %328 = vmatprep.subr.mxu0 0.0
    %329 = vmatpush1.msra.mxu0 0.0
    %330 = vmatprep.subr.mxu0 0.0
    %331 = vmatpush1.msra.mxu0 0.0
    %332 = vmatprep.subr.mxu0 0.0
    %333 = vmatpush1.msra.mxu0 0.0
    %334 = vmatprep.subr.mxu0 0.0
    %335 = vmatpush1.msra.mxu0 0.0
    %336 = vmatprep.subr.mxu0 0.0
    %337 = vmatpush1.msra.mxu0 0.0
    %338 = vmatprep.subr.mxu0 0.0
    %339 = vmatpush1.msra.mxu0 0.0
    %340 = vmatprep.subr.mxu0 0.0
    %341 = vmatpush1.msra.mxu0 0.0
    %342 = vmatprep.subr.mxu0 0.0
    %343 = vmatpush1.msra.mxu0 0.0
    %344 = vmatprep.subr.mxu0 0.0
    %345 = vmatpush1.msra.mxu0 0.0
    %346 = vmatprep.subr.mxu0 0.0
    %347 = vmatpush1.msra.mxu0 0.0
    %348 = vmatprep.mubr.f32.mxu0 0.0
    %349 = vmatmul.mubr.f32.gmra.mrb[0].mxu0 %v260
    %v350 = vpop.f32.mrb[0].mxu0
    %v351 = vadd.f32 %v282, %v350
    %v352 = vpop.f32.mrb[0].mxu0
    %353 = vdwg.mxu0
    %v354 = vlaneseq
    %v355 = vand.u32 %v354, 127
    %vm356 = vcmp.lt.s32.totalorder %v355, 16
    %v357 = vsel %vm356, %v351, -1e+30
    %358 = vmax.xlane.f32.xlu0 %v357
    %v359 = vpop.xlane.xlu0 %358
    %v360 = vsub.f32 %v357, %v359
    %v361 = vmul.f32 %v360, 1.442695
    %v362 = vpow.pop %v361
    %363 = vadd.xlane.f32.xlu0 %v362
    %v364 = vpop.xlane.xlu0 %363
    %v365 = vrcp.pop %v364
    %v366 = vmul.f32 1.0, %v365
    %v367 = vmul.f32 %v362, %v366
    %368 = vst [vmem:[#allocation10] sm:$0xff] %v367
    // Predicated region
    $region46: #{_forward_impl.1} parent=1 // pred_check
      _
    $region47: #{_forward_impl.1} parent=1 // pred_check_branch
      %370 = sbr.rel (0) target = $region49
    $region48: #{_forward_impl.1} parent=1 // pred_region
      %s372 = ssub.s32 128, 128
      %373 = vsyncadd [#allocation4], %s372
      %s375 = sshll.u32 [#allocation10], 4
      %s376 = int_to_ptr.vmem [resolvable:$true] %s375
      %378 = dma.vmem_to_hbm [thread:$0]  %s376, 128, %s7, [#allocation4]
    $region49: #{_forward_impl.1} parent=1 // pred_fallthru
      _
    // Predicated region
    $region50: #{_forward_impl.1} parent=1 // pred_check
      _
    $region51: #{_forward_impl.1} parent=1 // pred_check_branch
      %380 = sbr.rel (0) target = $region53
    $region52: #{_forward_impl.1} parent=1 // pred_region
      %381 = dma.done [#allocation4], 128
    $region53: #{_forward_impl.1} parent=1 // pred_fallthru
      _
    %382 = vsyncpa [#allocation3], 1
    %383 = vsyncpa [#allocation6], 1
    %384 = vsyncpa [#allocation9], 1
    %385 = vsyncpa [#allocation4], 1

// kernel: _forward_impl.1
$region0: #{_forward_impl.1}
  #allocation0 [shape = 'u32[]', space=smem, size = 0x4, offset = 0x4, fixed_abs, tag = 'smem constant byte address 0x4 - core index']
  #allocation1 [shape = 'u32[144,128]{1,0:T(1,128)}', space=vmem, size = 0x12000, scoped, tag = 'internal scratch']
  %s0 = inlined_call_operand.hbm [shape: f32[8,32], index: 0, kind: input, shape index: {}]
  %s1 = inlined_call_operand.hbm [shape: f32[32,128], index: 1, kind: input, shape index: {}]
  %s2 = inlined_call_operand.vmem [shape: f32[1,128], index: 2, kind: input, shape index: {}]
  %s3 = inlined_call_operand.hbm [shape: f32[128,128], index: 3, kind: input, shape index: {}]
  %s4 = inlined_call_operand.vmem [shape: f32[1,128], index: 4, kind: input, shape index: {}]
  %s5 = inlined_call_operand.hbm [shape: f32[128,128], index: 5, kind: input, shape index: {}]
  %s6 = inlined_call_operand.vmem [shape: f32[1,128], index: 6, kind: input, shape index: {}]
  %s7 = inlined_call_operand.hbm [shape: f32[8,128], index: 7, kind: output, shape index: {}]
  %s8 = sld [smem:[#allocation0]]
  $region54: #{_forward_impl.1} parent=0
    _
  %s10 = ssub.s32 1, %s8
  %s11 = scalar_select 0, %s10, %s8
  $region1: #{_forward_impl.1} parent=0
    #allocation2 [shape = 'u8[4096]{0}', space=vmem, size = 0x1000, scoped, tag = 'input window, operand 0, single buffered']
    #allocation3 [shape = 's32[1]{0}', space=sflag, size = 0x4, scoped, tag = 'scoped memory for _forward_impl.1']
    #allocation4 [shape = 's32[1]{0}', space=sflag, size = 0x4, scoped, tag = 'scoped memory for _forward_impl.1']
    #allocation5 [shape = 'u8[16384]{0}', space=vmem, size = 0x4000, scoped, tag = 'input window, operand 1, single buffered']
    #allocation6 [shape = 's32[1]{0}', space=sflag, size = 0x4, scoped, tag = 'scoped memory for _forward_impl.1']
    #allocation7 [shape = 'u8[65536]{0}', space=vmem, size = 0x10000, scoped, tag = 'input window, operand 3, single buffered']
    #allocation8 [shape = 'u8[65536]{0}', space=vmem, size = 0x10000, scoped, tag = 'input window, operand 5, single buffered']
    #allocation9 [shape = 's32[1]{0}', space=sflag, size = 0x4, scoped, tag = 'scoped memory for _forward_impl.1']
    #allocation10 [shape = 'u8[4096]{0}', space=vmem, size = 0x1000, scoped, tag = 'output window, operand 0, single buffered']
    %12 = vsyncpa [#allocation3], 0
    %13 = vsyncpa [#allocation6], 0
    %14 = vsyncpa [#allocation9], 0
    %15 = vsyncpa [#allocation4], 0
    // Predicated region
    $region2: #{_forward_impl.1} parent=1 // pred_check
      _
    $region3: #{_forward_impl.1} parent=1 // pred_check_branch
      %17 = sbr.rel (0) target = $region5
    $region4: #{_forward_impl.1} parent=1 // pred_region
      %s19 = ssub.s32 128, 128
      %20 = vsyncadd [#allocation3], %s19
      %s22 = sshll.u32 [#allocation2], 4
      %s23 = int_to_ptr.vmem [resolvable:$true] %s22
      %25 = dma.hbm_to_vmem [thread:$0]  %s0, 128, %s23, [#allocation3]
    $region5: #{_forward_impl.1} parent=1 // pred_fallthru
      _
    // Predicated region
    $region6: #{_forward_impl.1} parent=1 // pred_check
      _
    $region7: #{_forward_impl.1} parent=1 // pred_check_branch
      %27 = sbr.rel (0) target = $region9
    $region8: #{_forward_impl.1} parent=1 // pred_region
      %s29 = ssub.s32 512, 512
      %30 = vsyncadd [#allocation6], %s29
      %s31 = sshll.u32 [#allocation5], 4
      %s32 = int_to_ptr.vmem [resolvable:$true] %s31
      %37 = dma.hbm_to_vmem [thread:$0]  %s1, 512, %s32, [#allocation6], 128, 128, 8
    $region9: #{_forward_impl.1} parent=1 // pred_fallthru
      _
    // Predicated region
    $region10: #{_forward_impl.1} parent=1 // pred_check
      _
    $region11: #{_forward_impl.1} parent=1 // pred_check_branch
      %39 = sbr.rel (0) target = $region13
    $region12: #{_forward_impl.1} parent=1 // pred_region
      _
    $region13: #{_forward_impl.1} parent=1 // pred_fallthru
      _
    // Predicated region
    $region14: #{_forward_impl.1} parent=1 // pred_check
      _
    $region15: #{_forward_impl.1} parent=1 // pred_check_branch
      %41 = sbr.rel (0) target = $region17
    $region16: #{_forward_impl.1} parent=1 // pred_region
      %s43 = ssub.s32 2048, 2048
      %44 = vsyncadd [#allocation6], %s43
      %s45 = sshll.u32 [#allocation7], 4
      %s46 = int_to_ptr.vmem [resolvable:$true] %s45
      %51 = dma.hbm_to_vmem [thread:$0]  %s3, 2048, %s46, [#allocation6], 128, 128, 8
    $region17: #{_forward_impl.1} parent=1 // pred_fallthru
      _
    // Predicated region
    $region18: #{_forward_impl.1} parent=1 // pred_check
      _
    $region19: #{_forward_impl.1} parent=1 // pred_check_branch
      %53 = sbr.rel (0) target = $region21
    $region20: #{_forward_impl.1} parent=1 // pred_region
      _
    $region21: #{_forward_impl.1} parent=1 // pred_fallthru
      _
    // Predicated region
    $region22: #{_forward_impl.1} parent=1 // pred_check
      _
    $region23: #{_forward_impl.1} parent=1 // pred_check_branch
      %55 = sbr.rel (0) target = $region25
    $region24: #{_forward_impl.1} parent=1 // pred_region
      %s57 = ssub.s32 2048, 2048
      %58 = vsyncadd [#allocation9], %s57
      %s59 = sshll.u32 [#allocation8], 4
      %s60 = int_to_ptr.vmem [resolvable:$true] %s59
      %65 = dma.hbm_to_vmem [thread:$0]  %s5, 2048, %s60, [#allocation9], 128, 128, 8
    $region25: #{_forward_impl.1} parent=1 // pred_fallthru
      _
    // Predicated region
    $region26: #{_forward_impl.1} parent=1 // pred_check
      _
    $region27: #{_forward_impl.1} parent=1 // pred_check_branch
      %67 = sbr.rel (0) target = $region29
    $region28: #{_forward_impl.1} parent=1 // pred_region
      _
    $region29: #{_forward_impl.1} parent=1 // pred_fallthru
      _
    // Predicated region
    $region30: #{_forward_impl.1} parent=1 // pred_check
      _
    $region31: #{_forward_impl.1} parent=1 // pred_check_branch
      %69 = sbr.rel (0) target = $region33
    $region32: #{_forward_impl.1} parent=1 // pred_region
      %70 = dma.done [#allocation3], 128
    $region33: #{_forward_impl.1} parent=1 // pred_fallthru
      _
    // Predicated region
    $region34: #{_forward_impl.1} parent=1 // pred_check
      _
    $region35: #{_forward_impl.1} parent=1 // pred_check_branch
      %72 = sbr.rel (0) target = $region37
    $region36: #{_forward_impl.1} parent=1 // pred_region
      %73 = dma.done [#allocation6], 512
    $region37: #{_forward_impl.1} parent=1 // pred_fallthru
      _
    // Predicated region
    $region38: #{_forward_impl.1} parent=1 // pred_check
      _
    $region39: #{_forward_impl.1} parent=1 // pred_check_branch
      %75 = sbr.rel (0) target = $region41
    $region40: #{_forward_impl.1} parent=1 // pred_region
      %76 = dma.done [#allocation6], 2048
    $region41: #{_forward_impl.1} parent=1 // pred_fallthru
      _
    // Predicated region
    $region42: #{_forward_impl.1} parent=1 // pred_check
      _
    $region43: #{_forward_impl.1} parent=1 // pred_check_branch
      %78 = sbr.rel (0) target = $region45
    $region44: #{_forward_impl.1} parent=1 // pred_region
      %79 = dma.done [#allocation9], 2048
    $region45: #{_forward_impl.1} parent=1 // pred_fallthru
      _
    %v80 = vld [vmem:[#allocation2] sm:$0xff]
    %v81 = vld [vmem:[#allocation5] sm:$0xff]
    %v82 = vld [vmem:[#allocation5 + $0x8] sm:$0xff]
    %v83 = vld [vmem:[#allocation5 + $0x10] sm:$0xff]
    %v84 = vld [vmem:[#allocation5 + $0x18] sm:$0xff]
    %v85 = vld [vmem:[%s2] sm:$0x1]
    %v87 = vlaneseq
    %v88 = vshrl.u32 %v87, 7
    %v89 = vsub.s32 0, %v88
    %v90 = vrot.slane %v85, %v89
    %vm92 = vcmask 261120
    %v94 = vsel %vm92, %v80, 0
    %96 = vmatprep.subr.mxu0 0.0
    %97 = vmatpush1.msra.mxu0 %v81
    %98 = vmatprep.subr.mxu0 0.0
    %99 = vmatpush1.msra.mxu0 %v82
    %100 = vmatprep.subr.mxu0 0.0
    %101 = vmatpush1.msra.mxu0 %v83
    %102 = vmatprep.subr.mxu0 0.0
    %103 = vmatpush1.msra.mxu0 %v84
    %104 = vmatprep.subr.mxu0 0.0
    %105 = vmatpush1.msra.mxu0 0.0
    %106 = vmatprep.subr.mxu0 0.0
    %107 = vmatpush1.msra.mxu0 0.0
    %108 = vmatprep.subr.mxu0 0.0
    %109 = vmatpush1.msra.mxu0 0.0
    %110 = vmatprep.subr.mxu0 0.0
    %111 = vmatpush1.msra.mxu0 0.0
    %112 = vmatprep.subr.mxu0 0.0
    %113 = vmatpush1.msra.mxu0 0.0
    %114 = vmatprep.subr.mxu0 0.0
    %115 = vmatpush1.msra.mxu0 0.0
    %116 = vmatprep.subr.mxu0 0.0
    %117 = vmatpush1.msra.mxu0 0.0
    %118 = vmatprep.subr.mxu0 0.0
    %119 = vmatpush1.msra.mxu0 0.0
    %120 = vmatprep.subr.mxu0 0.0
    %121 = vmatpush1.msra.mxu0 0.0
    %122 = vmatprep.subr.mxu0 0.0
    %123 = vmatpush1.msra.mxu0 0.0
    %124 = vmatprep.subr.mxu0 0.0
    %125 = vmatpush1.msra.mxu0 0.0
    %126 = vmatprep.subr.mxu0 0.0
    %127 = vmatpush1.msra.mxu0 0.0
    %128 = vmatprep.subr.mxu0 0.0
    %129 = vmatpush1.msra.mxu0 0.0
    %130 = vmatprep.subr.mxu0 0.0
    %131 = vmatpush1.msra.mxu0 0.0
    %132 = vmatprep.subr.mxu0 0.0
    %133 = vmatpush1.msra.mxu0 0.0
    %134 = vmatprep.subr.mxu0 0.0
    %135 = vmatpush1.msra.mxu0 0.0
    %136 = vmatprep.subr.mxu0 0.0
    %137 = vmatpush1.msra.mxu0 0.0
    %138 = vmatprep.subr.mxu0 0.0
    %139 = vmatpush1.msra.mxu0 0.0
    %140 = vmatprep.subr.mxu0 0.0
    %141 = vmatpush1.msra.mxu0 0.0
    %142 = vmatprep.subr.mxu0 0.0
    %143 = vmatpush1.msra.mxu0 0.0
    %144 = vmatprep.subr.mxu0 0.0
    %145 = vmatpush1.msra.mxu0 0.0
    %146 = vmatprep.subr.mxu0 0.0
    %147 = vmatpush1.msra.mxu0 0.0
    %148 = vmatprep.subr.mxu0 0.0
    %149 = vmatpush1.msra.mxu0 0.0
    %150 = vmatprep.subr.mxu0 0.0
    %151 = vmatpush1.msra.mxu0 0.0
    %152 = vmatprep.subr.mxu0 0.0
    %153 = vmatpush1.msra.mxu0 0.0
    %154 = vmatprep.subr.mxu0 0.0
    %155 = vmatpush1.msra.mxu0 0.0
    %156 = vmatprep.subr.mxu0 0.0
    %157 = vmatpush1.msra.mxu0 0.0
    %158 = vmatprep.subr.mxu0 0.0
    %159 = vmatpush1.msra.mxu0 0.0
    %160 = vmatprep.mubr.f32.mxu0 0.0
    %161 = vmatmul.mubr.f32.gmra.mrb[0].mxu0 %v94
    %v162 = vpop.f32.mrb[0].mxu0
    %v163 = vadd.f32 %v90, %v162
    %v164 = vpop.f32.mrb[0].mxu0
    %165 = vdwg.mxu0
    %v166 = vmax.f32 %v163, 0.0
    %v167 = vld [vmem:[#allocation7] sm:$0xff]
    %v168 = vld [vmem:[#allocation7 + $0x8] sm:$0xff]
    %v169 = vld [vmem:[#allocation7 + $0x10] sm:$0xff]
    %v170 = vld [vmem:[#allocation7 + $0x18] sm:$0xff]
    %v171 = vld [vmem:[#allocation7 + $0x20] sm:$0xff]
    %v172 = vld [vmem:[#allocation7 + $0x28] sm:$0xff]
    %v173 = vld [vmem:[#allocation7 + $0x30] sm:$0xff]
    %v174 = vld [vmem:[#allocation7 + $0x38] sm:$0xff]
    %v175 = vld [vmem:[#allocation7 + $0x40] sm:$0xff]
    %v176 = vld [vmem:[#allocation7 + $0x48] sm:$0xff]
    %v177 = vld [vmem:[#allocation7 + $0x50] sm:$0xff]
    %v178 = vld [vmem:[#allocation7 + $0x58] sm:$0xff]
    %v179 = vld [vmem:[#allocation7 + $0x60] sm:$0xff]
    %v180 = vld [vmem:[#allocation7 + $0x68] sm:$0xff]
    %v181 = vld [vmem:[#allocation7 + $0x70] sm:$0xff]
    %v182 = vld [vmem:[#allocation7 + $0x78] sm:$0xff]
    %v183 = vld [vmem:[%s4] sm:$0x1]
    %v185 = vlaneseq
    %v186 = vshrl.u32 %v185, 7
    %v187 = vsub.s32 0, %v186
    %v188 = vrot.slane %v183, %v187
    %190 = vmatprep.subr.mxu0 0.0
    %191 = vmatpush1.msra.mxu0 %v167
    %192 = vmatprep.subr.mxu0 0.0
    %193 = vmatpush1.msra.mxu0 %v168
    %194 = vmatprep.subr.mxu0 0.0
    %195 = vmatpush1.msra.mxu0 %v169
    %196 = vmatprep.subr.mxu0 0.0
    %197 = vmatpush1.msra.mxu0 %v170
    %198 = vmatprep.subr.mxu0 0.0
    %199 = vmatpush1.msra.mxu0 %v171
    %200 = vmatprep.subr.mxu0 0.0
    %201 = vmatpush1.msra.mxu0 %v172
    %202 = vmatprep.subr.mxu0 0.0
    %203 = vmatpush1.msra.mxu0 %v173
    %204 = vmatprep.subr.mxu0 0.0
    %205 = vmatpush1.msra.mxu0 %v174
    %206 = vmatprep.subr.mxu0 0.0
    %207 = vmatpush1.msra.mxu0 %v175
    %208 = vmatprep.subr.mxu0 0.0
    %209 = vmatpush1.msra.mxu0 %v176
    %210 = vmatprep.subr.mxu0 0.0
    %211 = vmatpush1.msra.mxu0 %v177
    %212 = vmatprep.subr.mxu0 0.0
    %213 = vmatpush1.msra.mxu0 %v178
    %214 = vmatprep.subr.mxu0 0.0
    %215 = vmatpush1.msra.mxu0 %v179
    %216 = vmatprep.subr.mxu0 0.0
    %217 = vmatpush1.msra.mxu0 %v180
    %218 = vmatprep.subr.mxu0 0.0
    %219 = vmatpush1.msra.mxu0 %v181
    %220 = vmatprep.subr.mxu0 0.0
    %221 = vmatpush1.msra.mxu0 %v182
    %222 = vmatprep.subr.mxu0 0.0
    %223 = vmatpush1.msra.mxu0 0.0
    %224 = vmatprep.subr.mxu0 0.0
    %225 = vmatpush1.msra.mxu0 0.0
    %226 = vmatprep.subr.mxu0 0.0
    %227 = vmatpush1.msra.mxu0 0.0
    %228 = vmatprep.subr.mxu0 0.0
    %229 = vmatpush1.msra.mxu0 0.0
    %230 = vmatprep.subr.mxu0 0.0
    %231 = vmatpush1.msra.mxu0 0.0
    %232 = vmatprep.subr.mxu0 0.0
    %233 = vmatpush1.msra.mxu0 0.0
    %234 = vmatprep.subr.mxu0 0.0
    %235 = vmatpush1.msra.mxu0 0.0
    %236 = vmatprep.subr.mxu0 0.0
    %237 = vmatpush1.msra.mxu0 0.0
    %238 = vmatprep.subr.mxu0 0.0
    %239 = vmatpush1.msra.mxu0 0.0
    %240 = vmatprep.subr.mxu0 0.0
    %241 = vmatpush1.msra.mxu0 0.0
    %242 = vmatprep.subr.mxu0 0.0
    %243 = vmatpush1.msra.mxu0 0.0
    %244 = vmatprep.subr.mxu0 0.0
    %245 = vmatpush1.msra.mxu0 0.0
    %246 = vmatprep.subr.mxu0 0.0
    %247 = vmatpush1.msra.mxu0 0.0
    %248 = vmatprep.subr.mxu0 0.0
    %249 = vmatpush1.msra.mxu0 0.0
    %250 = vmatprep.subr.mxu0 0.0
    %251 = vmatpush1.msra.mxu0 0.0
    %252 = vmatprep.subr.mxu0 0.0
    %253 = vmatpush1.msra.mxu0 0.0
    %254 = vmatprep.mubr.f32.mxu0 0.0
    %255 = vmatmul.mubr.f32.gmra.mrb[0].mxu0 %v166
    %v256 = vpop.f32.mrb[0].mxu0
    %v257 = vadd.f32 %v188, %v256
    %v258 = vpop.f32.mrb[0].mxu0
    %259 = vdwg.mxu0
    %v260 = vmax.f32 %v257, 0.0
    %v261 = vld [vmem:[#allocation8] sm:$0xff]
    %v262 = vld [vmem:[#allocation8 + $0x8] sm:$0xff]
    %v263 = vld [vmem:[#allocation8 + $0x10] sm:$0xff]
    %v264 = vld [vmem:[#allocation8 + $0x18] sm:$0xff]
    %v265 = vld [vmem:[#allocation8 + $0x20] sm:$0xff]
    %v266 = vld [vmem:[#allocation8 + $0x28] sm:$0xff]
    %v267 = vld [vmem:[#allocation8 + $0x30] sm:$0xff]
    %v268 = vld [vmem:[#allocation8 + $0x38] sm:$0xff]
    %v269 = vld [vmem:[#allocation8 + $0x40] sm:$0xff]
    %v270 = vld [vmem:[#allocation8 + $0x48] sm:$0xff]
    %v271 = vld [vmem:[#allocation8 + $0x50] sm:$0xff]
    %v272 = vld [vmem:[#allocation8 + $0x58] sm:$0xff]
    %v273 = vld [vmem:[#allocation8 + $0x60] sm:$0xff]
    %v274 = vld [vmem:[#allocation8 + $0x68] sm:$0xff]
    %v275 = vld [vmem:[#allocation8 + $0x70] sm:$0xff]
    %v276 = vld [vmem:[#allocation8 + $0x78] sm:$0xff]
    %v277 = vld [vmem:[%s6] sm:$0x1]
    %v279 = vlaneseq
    %v280 = vshrl.u32 %v279, 7
    %v281 = vsub.s32 0, %v280
    %v282 = vrot.slane %v277, %v281
    %284 = vmatprep.subr.mxu0 0.0
    %285 = vmatpush1.msra.mxu0 %v261
    %286 = vmatprep.subr.mxu0 0.0
    %287 = vmatpush1.msra.mxu0 %v262
    %288 = vmatprep.subr.mxu0 0.0
    %289 = vmatpush1.msra.mxu0 %v263
    %290 = vmatprep.subr.mxu0 0.0
    %291 = vmatpush1.msra.mxu0 %v264
    %292 = vmatprep.subr.mxu0 0.0
    %293 = vmatpush1.msra.mxu0 %v265
    %294 = vmatprep.subr.mxu0 0.0
    %295 = vmatpush1.msra.mxu0 %v266
    %296 = vmatprep.subr.mxu0 0.0
    %297 = vmatpush1.msra.mxu0 %v267
    %298 = vmatprep.subr.mxu0 0.0
    %299 = vmatpush1.msra.mxu0 %v268
    %300 = vmatprep.subr.mxu0 0.0
    %301 = vmatpush1.msra.mxu0 %v269
    %302 = vmatprep.subr.mxu0 0.0
    %303 = vmatpush1.msra.mxu0 %v270
    %304 = vmatprep.subr.mxu0 0.0
    %305 = vmatpush1.msra.mxu0 %v271
    %306 = vmatprep.subr.mxu0 0.0
    %307 = vmatpush1.msra.mxu0 %v272
    %308 = vmatprep.subr.mxu0 0.0
    %309 = vmatpush1.msra.mxu0 %v273
    %310 = vmatprep.subr.mxu0 0.0
    %311 = vmatpush1.msra.mxu0 %v274
    %312 = vmatprep.subr.mxu0 0.0
    %313 = vmatpush1.msra.mxu0 %v275
    %314 = vmatprep.subr.mxu0 0.0
    %315 = vmatpush1.msra.mxu0 %v276
    %316 = vmatprep.subr.mxu0 0.0
    %317 = vmatpush1.msra.mxu0 0.0
    %318 = vmatprep.subr.mxu0 0.0
    %319 = vmatpush1.msra.mxu0 0.0
    %320 = vmatprep.subr.mxu0 0.0
    %321 = vmatpush1.msra.mxu0 0.0
    %322 = vmatprep.subr.mxu0 0.0
    %323 = vmatpush1.msra.mxu0 0.0
    %324 = vmatprep.subr.mxu0 0.0
    %325 = vmatpush1.msra.mxu0 0.0
    %326 = vmatprep.subr.mxu0 0.0
    %327 = vmatpush1.msra.mxu0 0.0
    %328 = vmatprep.subr.mxu0 0.0
    %329 = vmatpush1.msra.mxu0 0.0
    %330 = vmatprep.subr.mxu0 0.0
    %331 = vmatpush1.msra.mxu0 0.0
    %332 = vmatprep.subr.mxu0 0.0
    %333 = vmatpush1.msra.mxu0 0.0
    %334 = vmatprep.subr.mxu0 0.0
    %335 = vmatpush1.msra.mxu0 0.0
    %336 = vmatprep.subr.mxu0 0.0
    %337 = vmatpush1.msra.mxu0 0.0
    %338 = vmatprep.subr.mxu0 0.0
    %339 = vmatpush1.msra.mxu0 0.0
    %340 = vmatprep.subr.mxu0 0.0
    %341 = vmatpush1.msra.mxu0 0.0
    %342 = vmatprep.subr.mxu0 0.0
    %343 = vmatpush1.msra.mxu0 0.0
    %344 = vmatprep.subr.mxu0 0.0
    %345 = vmatpush1.msra.mxu0 0.0
    %346 = vmatprep.subr.mxu0 0.0
    %347 = vmatpush1.msra.mxu0 0.0
    %348 = vmatprep.mubr.f32.mxu0 0.0
    %349 = vmatmul.mubr.f32.gmra.mrb[0].mxu0 %v260
    %v350 = vpop.f32.mrb[0].mxu0
    %v351 = vadd.f32 %v282, %v350
    %v352 = vpop.f32.mrb[0].mxu0
    %353 = vdwg.mxu0
    %v354 = vlaneseq
    %v355 = vand.u32 %v354, 127
    %vm356 = vcmp.lt.s32.totalorder %v355, 16
    %v357 = vsel %vm356, %v351, -1e+30
    %358 = vmax.xlane.f32.xlu0 %v357
    %v359 = vpop.xlane.xlu0 %358
    %v360 = vsub.f32 %v357, %v359
    %v361 = vmul.f32 %v360, 1.442695
    %v362 = vpow.pop %v361
    %363 = vadd.xlane.f32.xlu0 %v362
    %v364 = vpop.xlane.xlu0 %363
    %v365 = vrcp.pop %v364
    %v366 = vmul.f32 1.0, %v365
    %v367 = vmul.f32 %v362, %v366
    %368 = vst [vmem:[#allocation10] sm:$0xff] %v367
    // Predicated region
    $region46: #{_forward_impl.1} parent=1 // pred_check
      _
    $region47: #{_forward_impl.1} parent=1 // pred_check_branch
      %370 = sbr.rel (0) target = $region49
    $region48: #{_forward_impl.1} parent=1 // pred_region
      %s372 = ssub.s32 128, 128
      %373 = vsyncadd [#allocation4], %s372
      %s375 = sshll.u32 [#allocation10], 4
      %s376 = int_to_ptr.vmem [resolvable:$true] %s375
      %378 = dma.vmem_to_hbm [thread:$0]  %s376, 128, %s7, [#allocation4]
    $region49: #{_forward_impl.1} parent=1 // pred_fallthru
      _
    // Predicated region
    $region50: #{_forward_impl.1} parent=1 // pred_check
      _
    $region51: #{_forward_impl.1} parent=1 // pred_check_branch
      %380 = sbr.rel (0) target = $region53
    $region52: #{_forward_impl.1} parent=1 // pred_region
      %381 = dma.done [#allocation4], 128
    $region53: #{_forward_impl.1} parent=1 // pred_fallthru
      _
    %382 = vsyncpa [#allocation3], 1
    %383 = vsyncpa [#allocation6], 1
    %384 = vsyncpa [#allocation9], 1
    %385 = vsyncpa [#allocation4], 1

</llo_original>
